<compile_context>
chip_gen: v6e
topology: v6e:2x2x1
jax: 0.10.0
libtpu: 0.0.40
codegen_flags: <defaults>
</compile_context>

<pallas_src>
import jax
import jax.numpy as jnp
from jax import lax
from jax.experimental import pallas as pl
from jax.experimental.pallas import tpu as pltpu

# ----------------------------- module config ------------------------------
VOCAB_SIZE = 50
EMBED_DIM = 16
PAD_IDX = 0
RNN_HIDDEN = 32
RNN_NUM_LAYERS = 1           # single layer
RNN_BIDIRECTIONAL = False
ANN_OUTPUT = 1               # -> last activation is Sigmoid
NUM_ANN_LAYERS = 2           # Linear(H, numFirst) -> ReLU -> Linear(numFirst, out)
ANN_NUM_FIRST = 16

BATCH = 2
SEQ_LEN = 8

BIAS_PAD = max(ANN_NUM_FIRST, ANN_OUTPUT)   # packed MLP-bias lane width


# ------------------------------ Pallas kernel -----------------------------
def rnn_ann_kernel(tok_ref,     # [S*B, 1] int32, time-major flattened (row = t*B + b)
                   proj_ref,    # [V, H]   f32 = embedding @ W_ih^T + (b_ih + b_hh)
                   whh_t_ref,   # [H, H]   = W_hh^T (pre-transposed)
                   w1_t_ref,    # [H, NF]  = W1^T
                   w2_t_ref,    # [NF, OUT]= W2^T
                   bias_ref,    # [2, BIAS_PAD] rows: b1, b2 (zero padded)
                   out_ref):    # [B, OUT]
    SB = tok_ref.shape[0]
    V, H = proj_ref.shape
    B, OUT = out_ref.shape
    NF = w2_t_ref.shape[0]
    S = SB // B

    # Packed MLP biases (pre-padded at pack time; sliced once here).
    b1 = bias_ref[0:1, :NF]         # [1, NF]
    b2 = bias_ref[1:2, :OUT]        # [1, OUT]

    # --- fused embedding gather + input projection + bias: one one-hot matmul ---
    tok = tok_ref[...]                                              # [S*B, 1] int32
    vocab_ids = lax.broadcasted_iota(jnp.int32, (SB, V), 1)         # [S*B, V]
    onehot = (vocab_ids == tok).astype(jnp.float32)                 # exact row-select
    xp = jnp.dot(onehot, proj_ref[...],
                 preferred_element_type=jnp.float32)                # [S*B, H] = x@Wih^T + b

    # --- tanh recurrence: only h @ W_hh^T is on the serial path; fully unrolled ---
    whh_t = whh_t_ref[...]
    h = jnp.tanh(xp[0:B, :])                                        # h0 = 0 -> W_hh term elided
    for t in range(1, S):                                           # static unroll (S small)
        h = jnp.tanh(xp[t * B:(t + 1) * B, :]
                     + jnp.dot(h, whh_t, preferred_element_type=jnp.float32))

    # --- simpleDenseModel MLP: Linear -> ReLU -> Linear, then Sigmoid ---
    a1 = jnp.maximum(
        jnp.dot(h, w1_t_ref[...], preferred_element_type=jnp.float32) + b1, 0.0)
    logits = jnp.dot(a1, w2_t_ref[...], preferred_element_type=jnp.float32) + b2
    out_ref[...] = jax.nn.sigmoid(logits)


# ------------------------------ JAX wrapper -------------------------------
@jax.jit
def rnn_ann_forward(tokens, kparams):
    B, S = tokens.shape
    # Time-major flatten of the tiny int32 token matrix (64 bytes) — the only host-side prep.
    tok_flat = jnp.transpose(tokens, (1, 0)).reshape(S * B, 1).astype(jnp.int32)

    vmem = pl.BlockSpec(memory_space=pltpu.MemorySpace.VMEM)
    out = pl.pallas_call(
        rnn_ann_kernel,
        out_shape=jax.ShapeDtypeStruct((B, ANN_OUTPUT), jnp.float32),
        in_specs=[vmem] * 6,
        out_specs=vmem,
    )(tok_flat,
      kparams["proj_table"], kparams["whh_t"],
      kparams["w1_t"], kparams["w2_t"], kparams["bias"])
    return out


# --------------------------- deterministic params -------------------------
def init_params(key):
    """PyTorch-convention parameters (used by the pure-JAX reference)."""
    ks = jax.random.split(key, 9)

    def uniform(k, shape, fan_in):
        bound = 1.0 / jnp.sqrt(jnp.float32(fan_in))
        return jax.random.uniform(k, shape, jnp.float32, -bound, bound)

    embedding = jax.random.normal(ks[0], (VOCAB_SIZE, EMBED_DIM), jnp.float32)
    embedding = embedding.at[PAD_IDX].set(0.0)           # padding_idx row is zero

    return {
        "embedding": embedding,
        # nn.RNN (layer 0, forward direction)
        "w_ih": uniform(ks[1], (RNN_HIDDEN, EMBED_DIM), RNN_HIDDEN),
        "w_hh": uniform(ks[2], (RNN_HIDDEN, RNN_HIDDEN), RNN_HIDDEN),
        "b_ih": uniform(ks[3], (1, RNN_HIDDEN), RNN_HIDDEN),
        "b_hh": uniform(ks[4], (1, RNN_HIDDEN), RNN_HIDDEN),
        # simpleDenseModel
        "w1": uniform(ks[5], (ANN_NUM_FIRST, RNN_HIDDEN), RNN_HIDDEN),
        "b1": uniform(ks[6], (1, ANN_NUM_FIRST), RNN_HIDDEN),
        "w2": uniform(ks[7], (ANN_OUTPUT, ANN_NUM_FIRST), ANN_NUM_FIRST),
        "b2": uniform(ks[8], (1, ANN_OUTPUT), ANN_NUM_FIRST),
    }


def pack_params(p):
    """One-time kernel-friendly repack: fuse embedding with the RNN input projection,
    pre-transpose remaining weights, fold + pack MLP biases."""
    # [V, H] = embedding @ W_ih^T + (b_ih + b_hh).  One-hot row-select of this table
    # reproduces nn.Embedding -> input-projection -> bias exactly (padding row -> just bias).
    proj_table = (p["embedding"] @ p["w_ih"].T + p["b_ih"] + p["b_hh"]).astype(jnp.float32)

    bias = jnp.zeros((2, BIAS_PAD), jnp.float32)
    bias = bias.at[0, :ANN_NUM_FIRST].set(p["b1"][0])
    bias = bias.at[1, :ANN_OUTPUT].set(p["b2"][0])
    return {
        "proj_table": proj_table,            # [V, H]
        "whh_t": jnp.asarray(p["w_hh"].T),   # [H, H]
        "w1_t": jnp.asarray(p["w1"].T),      # [H, NF]
        "w2_t": jnp.asarray(p["w2"].T),      # [NF, OUT]
        "bias": bias,                        # [2, BIAS_PAD]
    }


# ------------------------------ pure-JAX ref -------------------------------
def reference_forward(tokens, p):
    emb = p["embedding"][tokens]                         # [B, S, E]
    B = tokens.shape[0]
    h = jnp.zeros((B, RNN_HIDDEN), jnp.float32)
    for t in range(tokens.shape[1]):
        h = jnp.tanh(emb[:, t, :] @ p["w_ih"].T + p["b_ih"]
                     + h @ p["w_hh"].T + p["b_hh"])
    a1 = jnp.maximum(h @ p["w1"].T + p["b1"], 0.0)
    return jax.nn.sigmoid(a1 @ p["w2"].T + p["b2"])


# ---------------------------------- main -----------------------------------
if __name__ == "__main__":
    key = jax.random.PRNGKey(0)
    k_tok, k_par = jax.random.split(key)

    tokens = jax.random.randint(k_tok, (BATCH, SEQ_LEN), 0, VOCAB_SIZE, jnp.int32)
    params = init_params(k_par)
    kparams = pack_params(params)          # one-time repack, outside the hot path

    out = rnn_ann_forward(tokens, kparams)
    out = jax.block_until_ready(out)

    ref = reference_forward(tokens, params)
    assert out.shape == (BATCH, ANN_OUTPUT)
    assert jnp.allclose(out, ref, atol=1e-5, rtol=1e-5), (out, ref)

    print("KERNEL_OK")
</pallas_src>

<mosaic_0001>
module attributes {stable_mosaic.version = 11 : i64} {
  func.func @rnn_ann_kernel(%arg0: memref<16x1xi32, #tpu.memory_space<vmem>>, %arg1: memref<50x32xf32, #tpu.memory_space<vmem>>, %arg2: memref<32x32xf32, #tpu.memory_space<vmem>>, %arg3: memref<32x16xf32, #tpu.memory_space<vmem>>, %arg4: memref<16x1xf32, #tpu.memory_space<vmem>>, %arg5: memref<2x16xf32, #tpu.memory_space<vmem>>, %arg6: memref<2x1xf32, #tpu.memory_space<vmem>>) attributes {dimension_semantics = [], scalar_prefetch = 0 : i64, scratch_operands = 0 : i64, tpu.core_type = #tpu.core_type<tc>} {
    %c0 = arith.constant 0 : index
    %c0_0 = arith.constant 0 : index
    %0 = vector.load %arg5[%c0, %c0_0] : memref<2x16xf32, #tpu.memory_space<vmem>>, vector<1x16xf32>
    %c1 = arith.constant 1 : index
    %c0_1 = arith.constant 0 : index
    %1 = vector.load %arg5[%c1, %c0_1] : memref<2x16xf32, #tpu.memory_space<vmem>>, vector<1x1xf32>
    %c0_2 = arith.constant 0 : index
    %c0_3 = arith.constant 0 : index
    %2 = vector.load %arg0[%c0_2, %c0_3] : memref<16x1xi32, #tpu.memory_space<vmem>>, vector<16x1xi32>
    %3 = tpu.iota {dimensions = array<i32: 1>} : vector<16x50xi32>
    %4 = vector.broadcast %2 : vector<16x1xi32> to vector<16x50xi32>
    %5 = arith.cmpi eq, %3, %4 : vector<16x50xi32>
    %6 = arith.extui %5 : vector<16x50xi1> to vector<16x50xi32>
    %7 = arith.sitofp %6 : vector<16x50xi32> to vector<16x50xf32>
    %c0_4 = arith.constant 0 : index
    %c0_5 = arith.constant 0 : index
    %8 = vector.load %arg1[%c0_4, %c0_5] : memref<50x32xf32, #tpu.memory_space<vmem>>, vector<50x32xf32>
    %cst = arith.constant dense<0.000000e+00> : vector<16x32xf32>
    %9 = tpu.matmul %7, %8, %cst {dimension_numbers = #tpu.dot_dimension_numbers<[1], [0], [0], [1], [0, 0, 1, 1], [], []>} : vector<16x50xf32>, vector<50x32xf32>, vector<16x32xf32> -> vector<16x32xf32>
    %c0_6 = arith.constant 0 : index
    %c0_7 = arith.constant 0 : index
    %10 = vector.load %arg2[%c0_6, %c0_7] : memref<32x32xf32, #tpu.memory_space<vmem>>, vector<32x32xf32>
    %11 = vector.extract_strided_slice %9 {offsets = [0, 0], sizes = [2, 32], strides = [1, 1]} : vector<16x32xf32> to vector<2x32xf32>
    %12 = math.tanh %11 : vector<2x32xf32>
    %13 = vector.extract_strided_slice %9 {offsets = [2, 0], sizes = [2, 32], strides = [1, 1]} : vector<16x32xf32> to vector<2x32xf32>
    %cst_8 = arith.constant dense<0.000000e+00> : vector<2x32xf32>
    %14 = tpu.matmul %12, %10, %cst_8 {dimension_numbers = #tpu.dot_dimension_numbers<[1], [0], [0], [1], [0, 0, 1, 1], [], []>} : vector<2x32xf32>, vector<32x32xf32>, vector<2x32xf32> -> vector<2x32xf32>
    %15 = arith.addf %13, %14 : vector<2x32xf32>
    %16 = math.tanh %15 : vector<2x32xf32>
    %17 = vector.extract_strided_slice %9 {offsets = [4, 0], sizes = [2, 32], strides = [1, 1]} : vector<16x32xf32> to vector<2x32xf32>
    %cst_9 = arith.constant dense<0.000000e+00> : vector<2x32xf32>
    %18 = tpu.matmul %16, %10, %cst_9 {dimension_numbers = #tpu.dot_dimension_numbers<[1], [0], [0], [1], [0, 0, 1, 1], [], []>} : vector<2x32xf32>, vector<32x32xf32>, vector<2x32xf32> -> vector<2x32xf32>
    %19 = arith.addf %17, %18 : vector<2x32xf32>
    %20 = math.tanh %19 : vector<2x32xf32>
    %21 = vector.extract_strided_slice %9 {offsets = [6, 0], sizes = [2, 32], strides = [1, 1]} : vector<16x32xf32> to vector<2x32xf32>
    %cst_10 = arith.constant dense<0.000000e+00> : vector<2x32xf32>
    %22 = tpu.matmul %20, %10, %cst_10 {dimension_numbers = #tpu.dot_dimension_numbers<[1], [0], [0], [1], [0, 0, 1, 1], [], []>} : vector<2x32xf32>, vector<32x32xf32>, vector<2x32xf32> -> vector<2x32xf32>
    %23 = arith.addf %21, %22 : vector<2x32xf32>
    %24 = math.tanh %23 : vector<2x32xf32>
    %25 = vector.extract_strided_slice %9 {offsets = [8, 0], sizes = [2, 32], strides = [1, 1]} : vector<16x32xf32> to vector<2x32xf32>
    %cst_11 = arith.constant dense<0.000000e+00> : vector<2x32xf32>
    %26 = tpu.matmul %24, %10, %cst_11 {dimension_numbers = #tpu.dot_dimension_numbers<[1], [0], [0], [1], [0, 0, 1, 1], [], []>} : vector<2x32xf32>, vector<32x32xf32>, vector<2x32xf32> -> vector<2x32xf32>
    %27 = arith.addf %25, %26 : vector<2x32xf32>
    %28 = math.tanh %27 : vector<2x32xf32>
    %29 = vector.extract_strided_slice %9 {offsets = [10, 0], sizes = [2, 32], strides = [1, 1]} : vector<16x32xf32> to vector<2x32xf32>
    %cst_12 = arith.constant dense<0.000000e+00> : vector<2x32xf32>
    %30 = tpu.matmul %28, %10, %cst_12 {dimension_numbers = #tpu.dot_dimension_numbers<[1], [0], [0], [1], [0, 0, 1, 1], [], []>} : vector<2x32xf32>, vector<32x32xf32>, vector<2x32xf32> -> vector<2x32xf32>
    %31 = arith.addf %29, %30 : vector<2x32xf32>
    %32 = math.tanh %31 : vector<2x32xf32>
    %33 = vector.extract_strided_slice %9 {offsets = [12, 0], sizes = [2, 32], strides = [1, 1]} : vector<16x32xf32> to vector<2x32xf32>
    %cst_13 = arith.constant dense<0.000000e+00> : vector<2x32xf32>
    %34 = tpu.matmul %32, %10, %cst_13 {dimension_numbers = #tpu.dot_dimension_numbers<[1], [0], [0], [1], [0, 0, 1, 1], [], []>} : vector<2x32xf32>, vector<32x32xf32>, vector<2x32xf32> -> vector<2x32xf32>
    %35 = arith.addf %33, %34 : vector<2x32xf32>
    %36 = math.tanh %35 : vector<2x32xf32>
    %37 = vector.extract_strided_slice %9 {offsets = [14, 0], sizes = [2, 32], strides = [1, 1]} : vector<16x32xf32> to vector<2x32xf32>
    %cst_14 = arith.constant dense<0.000000e+00> : vector<2x32xf32>
    %38 = tpu.matmul %36, %10, %cst_14 {dimension_numbers = #tpu.dot_dimension_numbers<[1], [0], [0], [1], [0, 0, 1, 1], [], []>} : vector<2x32xf32>, vector<32x32xf32>, vector<2x32xf32> -> vector<2x32xf32>
    %39 = arith.addf %37, %38 : vector<2x32xf32>
    %40 = math.tanh %39 : vector<2x32xf32>
    %c0_15 = arith.constant 0 : index
    %c0_16 = arith.constant 0 : index
    %41 = vector.load %arg3[%c0_15, %c0_16] : memref<32x16xf32, #tpu.memory_space<vmem>>, vector<32x16xf32>
    %cst_17 = arith.constant dense<0.000000e+00> : vector<2x16xf32>
    %42 = tpu.matmul %40, %41, %cst_17 {dimension_numbers = #tpu.dot_dimension_numbers<[1], [0], [0], [1], [0, 0, 1, 1], [], []>} : vector<2x32xf32>, vector<32x16xf32>, vector<2x16xf32> -> vector<2x16xf32>
    %43 = vector.broadcast %0 : vector<1x16xf32> to vector<2x16xf32>
    %44 = arith.addf %42, %43 : vector<2x16xf32>
    %cst_18 = arith.constant 0.000000e+00 : f32
    %45 = vector.broadcast %cst_18 : f32 to vector<2x16xf32>
    %46 = arith.maximumf %44, %45 : vector<2x16xf32>
    %c0_19 = arith.constant 0 : index
    %c0_20 = arith.constant 0 : index
    %47 = vector.load %arg4[%c0_19, %c0_20] : memref<16x1xf32, #tpu.memory_space<vmem>>, vector<16x1xf32>
    %cst_21 = arith.constant dense<0.000000e+00> : vector<2x1xf32>
    %48 = tpu.matmul %46, %47, %cst_21 {dimension_numbers = #tpu.dot_dimension_numbers<[1], [0], [0], [1], [0, 0, 1, 1], [], []>} : vector<2x16xf32>, vector<16x1xf32>, vector<2x1xf32> -> vector<2x1xf32>
    %49 = vector.broadcast %1 : vector<1x1xf32> to vector<2x1xf32>
    %50 = arith.addf %48, %49 : vector<2x1xf32>
    %51 = arith.negf %50 : vector<2x1xf32>
    %52 = math.exp %51 : vector<2x1xf32>
    %cst_22 = arith.constant 1.000000e+00 : f32
    %53 = vector.broadcast %cst_22 : f32 to vector<2x1xf32>
    %54 = arith.addf %53, %52 : vector<2x1xf32>
    %55 = arith.divf %53, %54 : vector<2x1xf32>
    %c0_23 = arith.constant 0 : index
    %c0_24 = arith.constant 0 : index
    %56 = vector.load %arg6[%c0_23, %c0_24] : memref<2x1xf32, #tpu.memory_space<vmem>>, vector<2x1xf32>
    tpu.vector_store %arg6[%c0_23, %c0_24], %55 {strides = array<i32>} : memref<2x1xf32, #tpu.memory_space<vmem>>, vector<2x1xf32>,
    return
  }
}

</mosaic_0001>

<llo_original>
// kernel: rnn_ann_forward.1
$region0: #{rnn_ann_forward.1}
  #allocation0 [shape = 'u32[]', space=smem, size = 0x4, offset = 0x4, fixed_abs, tag = 'smem constant byte address 0x4 - core index']
  #allocation1 [shape = 'u32[144,128]{1,0:T(1,128)}', space=vmem, size = 0x12000, scoped, tag = 'internal scratch']
  %s0 = inlined_call_operand.vmem [shape: s32[16,1], index: 0, kind: input, shape index: {}]
  %s1 = inlined_call_operand.vmem [shape: f32[50,32], index: 1, kind: input, shape index: {}]
  %s2 = inlined_call_operand.vmem [shape: f32[32,32], index: 2, kind: input, shape index: {}]
  %s3 = inlined_call_operand.vmem [shape: f32[32,16], index: 3, kind: input, shape index: {}]
  %s4 = inlined_call_operand.vmem [shape: f32[16,1], index: 4, kind: input, shape index: {}]
  %s5 = inlined_call_operand.vmem [shape: f32[2,16], index: 5, kind: input, shape index: {}]
  %s6 = inlined_call_operand.vmem [shape: f32[2,1], index: 6, kind: output, shape index: {}]
  %s7 = sld [smem:[#allocation0]]
  $region34: #{rnn_ann_forward.1} parent=0
    _
  %s9 = ssub.s32 1, %s7
  %s10 = scalar_select 0, %s9, %s7
  // Predicated region
  $region2: #{rnn_ann_forward.1} parent=0 // pred_check
    _
  $region3: #{rnn_ann_forward.1} parent=0 // pred_check_branch
    %12 = sbr.rel (0) target = $region5
  $region4: #{rnn_ann_forward.1} parent=0 // pred_region
    _
  $region5: #{rnn_ann_forward.1} parent=0 // pred_fallthru
    _
  // Predicated region
  $region6: #{rnn_ann_forward.1} parent=0 // pred_check
    _
  $region7: #{rnn_ann_forward.1} parent=0 // pred_check_branch
    %14 = sbr.rel (0) target = $region9
  $region8: #{rnn_ann_forward.1} parent=0 // pred_region
    _
  $region9: #{rnn_ann_forward.1} parent=0 // pred_fallthru
    _
  // Predicated region
  $region10: #{rnn_ann_forward.1} parent=0 // pred_check
    _
  $region11: #{rnn_ann_forward.1} parent=0 // pred_check_branch
    %16 = sbr.rel (0) target = $region13
  $region12: #{rnn_ann_forward.1} parent=0 // pred_region
    _
  $region13: #{rnn_ann_forward.1} parent=0 // pred_fallthru
    _
  // Predicated region
  $region14: #{rnn_ann_forward.1} parent=0 // pred_check
    _
  $region15: #{rnn_ann_forward.1} parent=0 // pred_check_branch
    %18 = sbr.rel (0) target = $region17
  $region16: #{rnn_ann_forward.1} parent=0 // pred_region
    _
  $region17: #{rnn_ann_forward.1} parent=0 // pred_fallthru
    _
  // Predicated region
  $region18: #{rnn_ann_forward.1} parent=0 // pred_check
    _
  $region19: #{rnn_ann_forward.1} parent=0 // pred_check_branch
    %20 = sbr.rel (0) target = $region21
  $region20: #{rnn_ann_forward.1} parent=0 // pred_region
    _
  $region21: #{rnn_ann_forward.1} parent=0 // pred_fallthru
    _
  // Predicated region
  $region22: #{rnn_ann_forward.1} parent=0 // pred_check
    _
  $region23: #{rnn_ann_forward.1} parent=0 // pred_check_branch
    %22 = sbr.rel (0) target = $region25
  $region24: #{rnn_ann_forward.1} parent=0 // pred_region
    _
  $region25: #{rnn_ann_forward.1} parent=0 // pred_fallthru
    _
  %v23 = vld [vmem:[%s5] sm:$0x1]
  %v24 = vld [vmem:[%s5 + $0x1] sm:$0x1]
  %v25 = vld [vmem:[%s0] sm:$0xff]
  %v26 = vld [vmem:[%s0 + $0x8] sm:$0xff]
  %v27 = vlaneseq
  %v28 = vand.u32 %v27, 127
  %29 = vset.pattern.permute.xlu0 0
  %30 = vperm.xlu0 %29, %v25
  %v31 = vpop.permute.xlu0 %30
  %32 = vset.pattern.permute.xlu0 0
  %33 = vperm.xlu0 %32, %v26
  %v34 = vpop.permute.xlu0 %33
  %vm35 = vcmp.eq.s32.totalorder %v28, %v31
  %vm36 = vcmp.eq.s32.totalorder %v28, %v34
  %v37 = vsel %vm35, 1, 0
  %v38 = vsel %vm36, 1, 0
  %v39 = vcvt.s32.f32 %v37
  %v40 = vcvt.s32.f32 %v38
  %v41 = vld [vmem:[%s1] sm:$0xff]
  %v42 = vld [vmem:[%s1 + $0x8] sm:$0xff]
  %v43 = vld [vmem:[%s1 + $0x10] sm:$0xff]
  %v44 = vld [vmem:[%s1 + $0x18] sm:$0xff]
  %v45 = vld [vmem:[%s1 + $0x20] sm:$0xff]
  %v46 = vld [vmem:[%s1 + $0x28] sm:$0xff]
  %v47 = vld [vmem:[%s1 + $0x30] sm:$0x3]
  %vm48 = vcmask 408576
  %v50 = vsel %vm48, %v39, 0
  %v53 = vsel %vm48, %v40, 0
  %vm55 = vcmask 1041408
  %v57 = vsel %vm55, %v47, 0
  %59 = vmatprep.subr.mxu0 0.0
  %60 = vmatpush1.msra.mxu0 0.0
  %61 = vmatprep.subr.mxu0 0.0
  %62 = vmatpush1.msra.mxu0 0.0
  %63 = vmatprep.subr.mxu0 0.0
  %64 = vmatpush1.msra.mxu0 0.0
  %65 = vmatprep.subr.mxu0 0.0
  %66 = vmatpush1.msra.mxu0 0.0
  %67 = vmatprep.subr.mxu0 0.0
  %68 = vmatpush1.msra.mxu0 0.0
  %69 = vmatprep.subr.mxu0 0.0
  %70 = vmatpush1.msra.mxu0 0.0
  %71 = vmatprep.subr.mxu0 0.0
  %72 = vmatpush1.msra.mxu0 0.0
  %73 = vmatprep.subr.mxu0 0.0
  %74 = vmatpush1.msra.mxu0 0.0
  %75 = vmatprep.subr.mxu0 0.0
  %76 = vmatpush1.msra.mxu0 0.0
  %77 = vmatprep.subr.mxu0 0.0
  %78 = vmatpush1.msra.mxu0 %v57
  %79 = vmatprep.subr.mxu0 0.0
  %80 = vmatpush1.msra.mxu0 %v46
  %81 = vmatprep.subr.mxu0 0.0
  %82 = vmatpush1.msra.mxu0 %v45
  %83 = vmatprep.subr.mxu0 0.0
  %84 = vmatpush1.msra.mxu0 %v44
  %85 = vmatprep.subr.mxu0 0.0
  %86 = vmatpush1.msra.mxu0 %v43
  %87 = vmatprep.subr.mxu0 0.0
  %88 = vmatpush1.msra.mxu0 %v42
  %89 = vmatprep.subr.mxu0 0.0
  %90 = vmatpush1.msra.mxu0 %v41
  %91 = vmatprep.subr.mxu0 0.0
  %92 = vmatpush2.msra.mxu0 0.0
  %93 = vmatprep.subr.mxu0 0.0
  %94 = vmatpush2.msra.mxu0 0.0
  %95 = vmatprep.subr.mxu0 0.0
  %96 = vmatpush2.msra.mxu0 0.0
  %97 = vmatprep.subr.mxu0 0.0
  %98 = vmatpush2.msra.mxu0 0.0
  %99 = vmatprep.subr.mxu0 0.0
  %100 = vmatpush2.msra.mxu0 0.0
  %101 = vmatprep.subr.mxu0 0.0
  %102 = vmatpush2.msra.mxu0 0.0
  %103 = vmatprep.subr.mxu0 0.0
  %104 = vmatpush2.msra.mxu0 0.0
  %105 = vmatprep.subr.mxu0 0.0
  %106 = vmatpush2.msra.mxu0 0.0
  %107 = vmatprep.subr.mxu0 0.0
  %108 = vmatpush2.msra.mxu0 0.0
  %109 = vmatprep.subr.mxu0 0.0
  %110 = vmatpush2.msra.mxu0 0.0
  %111 = vmatprep.subr.mxu0 0.0
  %112 = vmatpush2.msra.mxu0 0.0
  %113 = vmatprep.subr.mxu0 0.0
  %114 = vmatpush2.msra.mxu0 0.0
  %115 = vmatprep.subr.mxu0 0.0
  %116 = vmatpush2.msra.mxu0 0.0
  %117 = vmatprep.subr.mxu0 0.0
  %118 = vmatpush2.msra.mxu0 0.0
  %119 = vmatprep.subr.mxu0 0.0
  %120 = vmatpush2.msra.mxu0 0.0
  %121 = vmatprep.subr.mxu0 0.0
  %122 = vmatpush2.msra.mxu0 0.0
  %123 = vmatprep.mubr.f32.mxu0 0.0
  %124 = vmatmul.mubr.f32.gmra.mxu0 %v50
  %v125 = vpop.f32.mrf.mxu0
  %v126 = vadd.f32 0.0, %v125
  %v127 = vpop.f32.mrf.mxu0
  %128 = vmatprep.mubr.f32.mxu0 0.0
  %129 = vmatmul.mubr.f32.gmra.mxu0 %v53
  %v130 = vpop.f32.mrf.mxu0
  %v131 = vadd.f32 0.0, %v130
  %v132 = vpop.f32.mrf.mxu0
  %133 = vdwg.mxu0
  %v134 = vld [vmem:[%s2] sm:$0xff]
  %v135 = vld [vmem:[%s2 + $0x8] sm:$0xff]
  %v136 = vld [vmem:[%s2 + $0x10] sm:$0xff]
  %v137 = vld [vmem:[%s2 + $0x18] sm:$0xff]
  %v138 = vtanh.pop %v126
  %vm139 = vcmask 261120
  %v141 = vsel %vm139, %v138, 0
  %143 = vmatprep.subr.mxu0 0.0
  %144 = vmatpush1.msra.mxu0 0.0
  %145 = vmatprep.subr.mxu0 0.0
  %146 = vmatpush1.msra.mxu0 0.0
  %147 = vmatprep.subr.mxu0 0.0
  %148 = vmatpush1.msra.mxu0 0.0
  %149 = vmatprep.subr.mxu0 0.0
  %150 = vmatpush1.msra.mxu0 0.0
  %151 = vmatprep.subr.mxu0 0.0
  %152 = vmatpush1.msra.mxu0 0.0
  %153 = vmatprep.subr.mxu0 0.0
  %154 = vmatpush1.msra.mxu0 0.0
  %155 = vmatprep.subr.mxu0 0.0
  %156 = vmatpush1.msra.mxu0 0.0
  %157 = vmatprep.subr.mxu0 0.0
  %158 = vmatpush1.msra.mxu0 0.0
  %159 = vmatprep.subr.mxu0 0.0
  %160 = vmatpush1.msra.mxu0 0.0
  %161 = vmatprep.subr.mxu0 0.0
  %162 = vmatpush1.msra.mxu0 0.0
  %163 = vmatprep.subr.mxu0 0.0
  %164 = vmatpush1.msra.mxu0 0.0
  %165 = vmatprep.subr.mxu0 0.0
  %166 = vmatpush1.msra.mxu0 0.0
  %167 = vmatprep.subr.mxu0 0.0
  %168 = vmatpush1.msra.mxu0 %v137
  %169 = vmatprep.subr.mxu0 0.0
  %170 = vmatpush1.msra.mxu0 %v136
  %171 = vmatprep.subr.mxu0 0.0
  %172 = vmatpush1.msra.mxu0 %v135
  %173 = vmatprep.subr.mxu0 0.0
  %174 = vmatpush1.msra.mxu0 %v134
  %175 = vmatprep.subr.mxu0 0.0
  %176 = vmatpush2.msra.mxu0 0.0
  %177 = vmatprep.subr.mxu0 0.0
  %178 = vmatpush2.msra.mxu0 0.0
  %179 = vmatprep.subr.mxu0 0.0
  %180 = vmatpush2.msra.mxu0 0.0
  %181 = vmatprep.subr.mxu0 0.0
  %182 = vmatpush2.msra.mxu0 0.0
  %183 = vmatprep.subr.mxu0 0.0
  %184 = vmatpush2.msra.mxu0 0.0
  %185 = vmatprep.subr.mxu0 0.0
  %186 = vmatpush2.msra.mxu0 0.0
  %187 = vmatprep.subr.mxu0 0.0
  %188 = vmatpush2.msra.mxu0 0.0
  %189 = vmatprep.subr.mxu0 0.0
  %190 = vmatpush2.msra.mxu0 0.0
  %191 = vmatprep.subr.mxu0 0.0
  %192 = vmatpush2.msra.mxu0 0.0
  %193 = vmatprep.subr.mxu0 0.0
  %194 = vmatpush2.msra.mxu0 0.0
  %195 = vmatprep.subr.mxu0 0.0
  %196 = vmatpush2.msra.mxu0 0.0
  %197 = vmatprep.subr.mxu0 0.0
  %198 = vmatpush2.msra.mxu0 0.0
  %199 = vmatprep.subr.mxu0 0.0
  %200 = vmatpush2.msra.mxu0 0.0
  %201 = vmatprep.subr.mxu0 0.0
  %202 = vmatpush2.msra.mxu0 0.0
  %203 = vmatprep.subr.mxu0 0.0
  %204 = vmatpush2.msra.mxu0 0.0
  %205 = vmatprep.subr.mxu0 0.0
  %206 = vmatpush2.msra.mxu0 0.0
  %207 = vmatprep.mubr.f32.mxu0 0.0
  %208 = vmatmul.mubr.f32.gmra.mxu0 %v141
  %v209 = vpop.f32.mrf.mxu0
  %v210 = vadd.f32 0.0, %v209
  %v211 = vpop.f32.mrf.mxu0
  %212 = vdwg.mxu0
  %v214 = vrot.slane %v210, 6
  %v216 = vadd.f32 %v126, %v214
  %v217 = vtanh.pop %v216
  %v219 = vrot.slane %v217, 2
  %v220 = vsel %vm139, %v219, 0
  %222 = vmatprep.subr.mxu0 0.0
  %223 = vmatpush1.msra.mxu0 0.0
  %224 = vmatprep.subr.mxu0 0.0
  %225 = vmatpush1.msra.mxu0 0.0
  %226 = vmatprep.subr.mxu0 0.0
  %227 = vmatpush1.msra.mxu0 0.0
  %228 = vmatprep.subr.mxu0 0.0
  %229 = vmatpush1.msra.mxu0 0.0
  %230 = vmatprep.subr.mxu0 0.0
  %231 = vmatpush1.msra.mxu0 0.0
  %232 = vmatprep.subr.mxu0 0.0
  %233 = vmatpush1.msra.mxu0 0.0
  %234 = vmatprep.subr.mxu0 0.0
  %235 = vmatpush1.msra.mxu0 0.0
  %236 = vmatprep.subr.mxu0 0.0
  %237 = vmatpush1.msra.mxu0 0.0
  %238 = vmatprep.subr.mxu0 0.0
  %239 = vmatpush1.msra.mxu0 0.0
  %240 = vmatprep.subr.mxu0 0.0
  %241 = vmatpush1.msra.mxu0 0.0
  %242 = vmatprep.subr.mxu0 0.0
  %243 = vmatpush1.msra.mxu0 0.0
  %244 = vmatprep.subr.mxu0 0.0
  %245 = vmatpush1.msra.mxu0 0.0
  %246 = vmatprep.subr.mxu0 0.0
  %247 = vmatpush1.msra.mxu0 %v137
  %248 = vmatprep.subr.mxu0 0.0
  %249 = vmatpush1.msra.mxu0 %v136
  %250 = vmatprep.subr.mxu0 0.0
  %251 = vmatpush1.msra.mxu0 %v135
  %252 = vmatprep.subr.mxu0 0.0
  %253 = vmatpush1.msra.mxu0 %v134
  %254 = vmatprep.subr.mxu0 0.0
  %255 = vmatpush2.msra.mxu0 0.0
  %256 = vmatprep.subr.mxu0 0.0
  %257 = vmatpush2.msra.mxu0 0.0
  %258 = vmatprep.subr.mxu0 0.0
  %259 = vmatpush2.msra.mxu0 0.0
  %260 = vmatprep.subr.mxu0 0.0
  %261 = vmatpush2.msra.mxu0 0.0
  %262 = vmatprep.subr.mxu0 0.0
  %263 = vmatpush2.msra.mxu0 0.0
  %264 = vmatprep.subr.mxu0 0.0
  %265 = vmatpush2.msra.mxu0 0.0
  %266 = vmatprep.subr.mxu0 0.0
  %267 = vmatpush2.msra.mxu0 0.0
  %268 = vmatprep.subr.mxu0 0.0
  %269 = vmatpush2.msra.mxu0 0.0
  %270 = vmatprep.subr.mxu0 0.0
  %271 = vmatpush2.msra.mxu0 0.0
  %272 = vmatprep.subr.mxu0 0.0
  %273 = vmatpush2.msra.mxu0 0.0
  %274 = vmatprep.subr.mxu0 0.0
  %275 = vmatpush2.msra.mxu0 0.0
  %276 = vmatprep.subr.mxu0 0.0
  %277 = vmatpush2.msra.mxu0 0.0
  %278 = vmatprep.subr.mxu0 0.0
  %279 = vmatpush2.msra.mxu0 0.0
  %280 = vmatprep.subr.mxu0 0.0
  %281 = vmatpush2.msra.mxu0 0.0
  %282 = vmatprep.subr.mxu0 0.0
  %283 = vmatpush2.msra.mxu0 0.0
  %284 = vmatprep.subr.mxu0 0.0
  %285 = vmatpush2.msra.mxu0 0.0
  %286 = vmatprep.mubr.f32.mxu0 0.0
  %287 = vmatmul.mubr.f32.gmra.mxu0 %v220
  %v288 = vpop.f32.mrf.mxu0
  %v289 = vadd.f32 0.0, %v288
  %v290 = vpop.f32.mrf.mxu0
  %291 = vdwg.mxu0
  %v293 = vrot.slane %v289, 4
  %v295 = vadd.f32 %v126, %v293
  %v296 = vtanh.pop %v295
  %v298 = vrot.slane %v296, 4
  %v299 = vsel %vm139, %v298, 0
  %301 = vmatprep.subr.mxu0 0.0
  %302 = vmatpush1.msra.mxu0 0.0
  %303 = vmatprep.subr.mxu0 0.0
  %304 = vmatpush1.msra.mxu0 0.0
  %305 = vmatprep.subr.mxu0 0.0
  %306 = vmatpush1.msra.mxu0 0.0
  %307 = vmatprep.subr.mxu0 0.0
  %308 = vmatpush1.msra.mxu0 0.0
  %309 = vmatprep.subr.mxu0 0.0
  %310 = vmatpush1.msra.mxu0 0.0
  %311 = vmatprep.subr.mxu0 0.0
  %312 = vmatpush1.msra.mxu0 0.0
  %313 = vmatprep.subr.mxu0 0.0
  %314 = vmatpush1.msra.mxu0 0.0
  %315 = vmatprep.subr.mxu0 0.0
  %316 = vmatpush1.msra.mxu0 0.0
  %317 = vmatprep.subr.mxu0 0.0
  %318 = vmatpush1.msra.mxu0 0.0
  %319 = vmatprep.subr.mxu0 0.0
  %320 = vmatpush1.msra.mxu0 0.0
  %321 = vmatprep.subr.mxu0 0.0
  %322 = vmatpush1.msra.mxu0 0.0
  %323 = vmatprep.subr.mxu0 0.0
  %324 = vmatpush1.msra.mxu0 0.0
  %325 = vmatprep.subr.mxu0 0.0
  %326 = vmatpush1.msra.mxu0 %v137
  %327 = vmatprep.subr.mxu0 0.0
  %328 = vmatpush1.msra.mxu0 %v136
  %329 = vmatprep.subr.mxu0 0.0
  %330 = vmatpush1.msra.mxu0 %v135
  %331 = vmatprep.subr.mxu0 0.0
  %332 = vmatpush1.msra.mxu0 %v134
  %333 = vmatprep.subr.mxu0 0.0
  %334 = vmatpush2.msra.mxu0 0.0
  %335 = vmatprep.subr.mxu0 0.0
  %336 = vmatpush2.msra.mxu0 0.0
  %337 = vmatprep.subr.mxu0 0.0
  %338 = vmatpush2.msra.mxu0 0.0
  %339 = vmatprep.subr.mxu0 0.0
  %340 = vmatpush2.msra.mxu0 0.0
  %341 = vmatprep.subr.mxu0 0.0
  %342 = vmatpush2.msra.mxu0 0.0
  %343 = vmatprep.subr.mxu0 0.0
  %344 = vmatpush2.msra.mxu0 0.0
  %345 = vmatprep.subr.mxu0 0.0
  %346 = vmatpush2.msra.mxu0 0.0
  %347 = vmatprep.subr.mxu0 0.0
  %348 = vmatpush2.msra.mxu0 0.0
  %349 = vmatprep.subr.mxu0 0.0
  %350 = vmatpush2.msra.mxu0 0.0
  %351 = vmatprep.subr.mxu0 0.0
  %352 = vmatpush2.msra.mxu0 0.0
  %353 = vmatprep.subr.mxu0 0.0
  %354 = vmatpush2.msra.mxu0 0.0
  %355 = vmatprep.subr.mxu0 0.0
  %356 = vmatpush2.msra.mxu0 0.0
  %357 = vmatprep.subr.mxu0 0.0
  %358 = vmatpush2.msra.mxu0 0.0
  %359 = vmatprep.subr.mxu0 0.0
  %360 = vmatpush2.msra.mxu0 0.0
  %361 = vmatprep.subr.mxu0 0.0
  %362 = vmatpush2.msra.mxu0 0.0
  %363 = vmatprep.subr.mxu0 0.0
  %364 = vmatpush2.msra.mxu0 0.0
  %365 = vmatprep.mubr.f32.mxu0 0.0
  %366 = vmatmul.mubr.f32.gmra.mxu0 %v299
  %v367 = vpop.f32.mrf.mxu0
  %v368 = vadd.f32 0.0, %v367
  %v369 = vpop.f32.mrf.mxu0
  %370 = vdwg.mxu0
  %v372 = vrot.slane %v368, 2
  %v374 = vadd.f32 %v126, %v372
  %v375 = vtanh.pop %v374
  %v377 = vrot.slane %v375, 6
  %v378 = vsel %vm139, %v377, 0
  %380 = vmatprep.subr.mxu0 0.0
  %381 = vmatpush1.msra.mxu0 0.0
  %382 = vmatprep.subr.mxu0 0.0
  %383 = vmatpush1.msra.mxu0 0.0
  %384 = vmatprep.subr.mxu0 0.0
  %385 = vmatpush1.msra.mxu0 0.0
  %386 = vmatprep.subr.mxu0 0.0
  %387 = vmatpush1.msra.mxu0 0.0
  %388 = vmatprep.subr.mxu0 0.0
  %389 = vmatpush1.msra.mxu0 0.0
  %390 = vmatprep.subr.mxu0 0.0
  %391 = vmatpush1.msra.mxu0 0.0
  %392 = vmatprep.subr.mxu0 0.0
  %393 = vmatpush1.msra.mxu0 0.0
  %394 = vmatprep.subr.mxu0 0.0
  %395 = vmatpush1.msra.mxu0 0.0
  %396 = vmatprep.subr.mxu0 0.0
  %397 = vmatpush1.msra.mxu0 0.0
  %398 = vmatprep.subr.mxu0 0.0
  %399 = vmatpush1.msra.mxu0 0.0
  %400 = vmatprep.subr.mxu0 0.0
  %401 = vmatpush1.msra.mxu0 0.0
  %402 = vmatprep.subr.mxu0 0.0
  %403 = vmatpush1.msra.mxu0 0.0
  %404 = vmatprep.subr.mxu0 0.0
  %405 = vmatpush1.msra.mxu0 %v137
  %406 = vmatprep.subr.mxu0 0.0
  %407 = vmatpush1.msra.mxu0 %v136
  %408 = vmatprep.subr.mxu0 0.0
  %409 = vmatpush1.msra.mxu0 %v135
  %410 = vmatprep.subr.mxu0 0.0
  %411 = vmatpush1.msra.mxu0 %v134
  %412 = vmatprep.subr.mxu0 0.0
  %413 = vmatpush2.msra.mxu0 0.0
  %414 = vmatprep.subr.mxu0 0.0
  %415 = vmatpush2.msra.mxu0 0.0
  %416 = vmatprep.subr.mxu0 0.0
  %417 = vmatpush2.msra.mxu0 0.0
  %418 = vmatprep.subr.mxu0 0.0
  %419 = vmatpush2.msra.mxu0 0.0
  %420 = vmatprep.subr.mxu0 0.0
  %421 = vmatpush2.msra.mxu0 0.0
  %422 = vmatprep.subr.mxu0 0.0
  %423 = vmatpush2.msra.mxu0 0.0
  %424 = vmatprep.subr.mxu0 0.0
  %425 = vmatpush2.msra.mxu0 0.0
  %426 = vmatprep.subr.mxu0 0.0
  %427 = vmatpush2.msra.mxu0 0.0
  %428 = vmatprep.subr.mxu0 0.0
  %429 = vmatpush2.msra.mxu0 0.0
  %430 = vmatprep.subr.mxu0 0.0
  %431 = vmatpush2.msra.mxu0 0.0
  %432 = vmatprep.subr.mxu0 0.0
  %433 = vmatpush2.msra.mxu0 0.0
  %434 = vmatprep.subr.mxu0 0.0
  %435 = vmatpush2.msra.mxu0 0.0
  %436 = vmatprep.subr.mxu0 0.0
  %437 = vmatpush2.msra.mxu0 0.0
  %438 = vmatprep.subr.mxu0 0.0
  %439 = vmatpush2.msra.mxu0 0.0
  %440 = vmatprep.subr.mxu0 0.0
  %441 = vmatpush2.msra.mxu0 0.0
  %442 = vmatprep.subr.mxu0 0.0
  %443 = vmatpush2.msra.mxu0 0.0
  %444 = vmatprep.mubr.f32.mxu0 0.0
  %445 = vmatmul.mubr.f32.gmra.mxu0 %v378
  %v446 = vpop.f32.mrf.mxu0
  %v447 = vadd.f32 0.0, %v446
  %v448 = vpop.f32.mrf.mxu0
  %449 = vdwg.mxu0
  %v450 = vadd.f32 %v131, %v447
  %v451 = vtanh.pop %v450
  %v453 = vsel %vm139, %v451, 0
  %455 = vmatprep.subr.mxu0 0.0
  %456 = vmatpush1.msra.mxu0 0.0
  %457 = vmatprep.subr.mxu0 0.0
  %458 = vmatpush1.msra.mxu0 0.0
  %459 = vmatprep.subr.mxu0 0.0
  %460 = vmatpush1.msra.mxu0 0.0
  %461 = vmatprep.subr.mxu0 0.0
  %462 = vmatpush1.msra.mxu0 0.0
  %463 = vmatprep.subr.mxu0 0.0
  %464 = vmatpush1.msra.mxu0 0.0
  %465 = vmatprep.subr.mxu0 0.0
  %466 = vmatpush1.msra.mxu0 0.0
  %467 = vmatprep.subr.mxu0 0.0
  %468 = vmatpush1.msra.mxu0 0.0
  %469 = vmatprep.subr.mxu0 0.0
  %470 = vmatpush1.msra.mxu0 0.0
  %471 = vmatprep.subr.mxu0 0.0
  %472 = vmatpush1.msra.mxu0 0.0
  %473 = vmatprep.subr.mxu0 0.0
  %474 = vmatpush1.msra.mxu0 0.0
  %475 = vmatprep.subr.mxu0 0.0
  %476 = vmatpush1.msra.mxu0 0.0
  %477 = vmatprep.subr.mxu0 0.0
  %478 = vmatpush1.msra.mxu0 0.0
  %479 = vmatprep.subr.mxu0 0.0
  %480 = vmatpush1.msra.mxu0 %v137
  %481 = vmatprep.subr.mxu0 0.0
  %482 = vmatpush1.msra.mxu0 %v136
  %483 = vmatprep.subr.mxu0 0.0
  %484 = vmatpush1.msra.mxu0 %v135
  %485 = vmatprep.subr.mxu0 0.0
  %486 = vmatpush1.msra.mxu0 %v134
  %487 = vmatprep.subr.mxu0 0.0
  %488 = vmatpush2.msra.mxu0 0.0
  %489 = vmatprep.subr.mxu0 0.0
  %490 = vmatpush2.msra.mxu0 0.0
  %491 = vmatprep.subr.mxu0 0.0
  %492 = vmatpush2.msra.mxu0 0.0
  %493 = vmatprep.subr.mxu0 0.0
  %494 = vmatpush2.msra.mxu0 0.0
  %495 = vmatprep.subr.mxu0 0.0
  %496 = vmatpush2.msra.mxu0 0.0
  %497 = vmatprep.subr.mxu0 0.0
  %498 = vmatpush2.msra.mxu0 0.0
  %499 = vmatprep.subr.mxu0 0.0
  %500 = vmatpush2.msra.mxu0 0.0
  %501 = vmatprep.subr.mxu0 0.0
  %502 = vmatpush2.msra.mxu0 0.0
  %503 = vmatprep.subr.mxu0 0.0
  %504 = vmatpush2.msra.mxu0 0.0
  %505 = vmatprep.subr.mxu0 0.0
  %506 = vmatpush2.msra.mxu0 0.0
  %507 = vmatprep.subr.mxu0 0.0
  %508 = vmatpush2.msra.mxu0 0.0
  %509 = vmatprep.subr.mxu0 0.0
  %510 = vmatpush2.msra.mxu0 0.0
  %511 = vmatprep.subr.mxu0 0.0
  %512 = vmatpush2.msra.mxu0 0.0
  %513 = vmatprep.subr.mxu0 0.0
  %514 = vmatpush2.msra.mxu0 0.0
  %515 = vmatprep.subr.mxu0 0.0
  %516 = vmatpush2.msra.mxu0 0.0
  %517 = vmatprep.subr.mxu0 0.0
  %518 = vmatpush2.msra.mxu0 0.0
  %519 = vmatprep.mubr.f32.mxu0 0.0
  %520 = vmatmul.mubr.f32.gmra.mxu0 %v453
  %v521 = vpop.f32.mrf.mxu0
  %v522 = vadd.f32 0.0, %v521
  %v523 = vpop.f32.mrf.mxu0
  %524 = vdwg.mxu0
  %v526 = vrot.slane %v522, 6
  %v528 = vadd.f32 %v131, %v526
  %v529 = vtanh.pop %v528
  %v531 = vrot.slane %v529, 2
  %v532 = vsel %vm139, %v531, 0
  %534 = vmatprep.subr.mxu0 0.0
  %535 = vmatpush1.msra.mxu0 0.0
  %536 = vmatprep.subr.mxu0 0.0
  %537 = vmatpush1.msra.mxu0 0.0
  %538 = vmatprep.subr.mxu0 0.0
  %539 = vmatpush1.msra.mxu0 0.0
  %540 = vmatprep.subr.mxu0 0.0
  %541 = vmatpush1.msra.mxu0 0.0
  %542 = vmatprep.subr.mxu0 0.0
  %543 = vmatpush1.msra.mxu0 0.0
  %544 = vmatprep.subr.mxu0 0.0
  %545 = vmatpush1.msra.mxu0 0.0
  %546 = vmatprep.subr.mxu0 0.0
  %547 = vmatpush1.msra.mxu0 0.0
  %548 = vmatprep.subr.mxu0 0.0
  %549 = vmatpush1.msra.mxu0 0.0
  %550 = vmatprep.subr.mxu0 0.0
  %551 = vmatpush1.msra.mxu0 0.0
  %552 = vmatprep.subr.mxu0 0.0
  %553 = vmatpush1.msra.mxu0 0.0
  %554 = vmatprep.subr.mxu0 0.0
  %555 = vmatpush1.msra.mxu0 0.0
  %556 = vmatprep.subr.mxu0 0.0
  %557 = vmatpush1.msra.mxu0 0.0
  %558 = vmatprep.subr.mxu0 0.0
  %559 = vmatpush1.msra.mxu0 %v137
  %560 = vmatprep.subr.mxu0 0.0
  %561 = vmatpush1.msra.mxu0 %v136
  %562 = vmatprep.subr.mxu0 0.0
  %563 = vmatpush1.msra.mxu0 %v135
  %564 = vmatprep.subr.mxu0 0.0
  %565 = vmatpush1.msra.mxu0 %v134
  %566 = vmatprep.subr.mxu0 0.0
  %567 = vmatpush2.msra.mxu0 0.0
  %568 = vmatprep.subr.mxu0 0.0
  %569 = vmatpush2.msra.mxu0 0.0
  %570 = vmatprep.subr.mxu0 0.0
  %571 = vmatpush2.msra.mxu0 0.0
  %572 = vmatprep.subr.mxu0 0.0
  %573 = vmatpush2.msra.mxu0 0.0
  %574 = vmatprep.subr.mxu0 0.0
  %575 = vmatpush2.msra.mxu0 0.0
  %576 = vmatprep.subr.mxu0 0.0
  %577 = vmatpush2.msra.mxu0 0.0
  %578 = vmatprep.subr.mxu0 0.0
  %579 = vmatpush2.msra.mxu0 0.0
  %580 = vmatprep.subr.mxu0 0.0
  %581 = vmatpush2.msra.mxu0 0.0
  %582 = vmatprep.subr.mxu0 0.0
  %583 = vmatpush2.msra.mxu0 0.0
  %584 = vmatprep.subr.mxu0 0.0
  %585 = vmatpush2.msra.mxu0 0.0
  %586 = vmatprep.subr.mxu0 0.0
  %587 = vmatpush2.msra.mxu0 0.0
  %588 = vmatprep.subr.mxu0 0.0
  %589 = vmatpush2.msra.mxu0 0.0
  %590 = vmatprep.subr.mxu0 0.0
  %591 = vmatpush2.msra.mxu0 0.0
  %592 = vmatprep.subr.mxu0 0.0
  %593 = vmatpush2.msra.mxu0 0.0
  %594 = vmatprep.subr.mxu0 0.0
  %595 = vmatpush2.msra.mxu0 0.0
  %596 = vmatprep.subr.mxu0 0.0
  %597 = vmatpush2.msra.mxu0 0.0
  %598 = vmatprep.mubr.f32.mxu0 0.0
  %599 = vmatmul.mubr.f32.gmra.mxu0 %v532
  %v600 = vpop.f32.mrf.mxu0
  %v601 = vadd.f32 0.0, %v600
  %v602 = vpop.f32.mrf.mxu0
  %603 = vdwg.mxu0
  %v605 = vrot.slane %v601, 4
  %v607 = vadd.f32 %v131, %v605
  %v608 = vtanh.pop %v607
  %v610 = vrot.slane %v608, 4
  %v611 = vsel %vm139, %v610, 0
  %613 = vmatprep.subr.mxu0 0.0
  %614 = vmatpush1.msra.mxu0 0.0
  %615 = vmatprep.subr.mxu0 0.0
  %616 = vmatpush1.msra.mxu0 0.0
  %617 = vmatprep.subr.mxu0 0.0
  %618 = vmatpush1.msra.mxu0 0.0
  %619 = vmatprep.subr.mxu0 0.0
  %620 = vmatpush1.msra.mxu0 0.0
  %621 = vmatprep.subr.mxu0 0.0
  %622 = vmatpush1.msra.mxu0 0.0
  %623 = vmatprep.subr.mxu0 0.0
  %624 = vmatpush1.msra.mxu0 0.0
  %625 = vmatprep.subr.mxu0 0.0
  %626 = vmatpush1.msra.mxu0 0.0
  %627 = vmatprep.subr.mxu0 0.0
  %628 = vmatpush1.msra.mxu0 0.0
  %629 = vmatprep.subr.mxu0 0.0
  %630 = vmatpush1.msra.mxu0 0.0
  %631 = vmatprep.subr.mxu0 0.0
  %632 = vmatpush1.msra.mxu0 0.0
  %633 = vmatprep.subr.mxu0 0.0
  %634 = vmatpush1.msra.mxu0 0.0
  %635 = vmatprep.subr.mxu0 0.0
  %636 = vmatpush1.msra.mxu0 0.0
  %637 = vmatprep.subr.mxu0 0.0
  %638 = vmatpush1.msra.mxu0 %v137
  %639 = vmatprep.subr.mxu0 0.0
  %640 = vmatpush1.msra.mxu0 %v136
  %641 = vmatprep.subr.mxu0 0.0
  %642 = vmatpush1.msra.mxu0 %v135
  %643 = vmatprep.subr.mxu0 0.0
  %644 = vmatpush1.msra.mxu0 %v134
  %645 = vmatprep.subr.mxu0 0.0
  %646 = vmatpush2.msra.mxu0 0.0
  %647 = vmatprep.subr.mxu0 0.0
  %648 = vmatpush2.msra.mxu0 0.0
  %649 = vmatprep.subr.mxu0 0.0
  %650 = vmatpush2.msra.mxu0 0.0
  %651 = vmatprep.subr.mxu0 0.0
  %652 = vmatpush2.msra.mxu0 0.0
  %653 = vmatprep.subr.mxu0 0.0
  %654 = vmatpush2.msra.mxu0 0.0
  %655 = vmatprep.subr.mxu0 0.0
  %656 = vmatpush2.msra.mxu0 0.0
  %657 = vmatprep.subr.mxu0 0.0
  %658 = vmatpush2.msra.mxu0 0.0
  %659 = vmatprep.subr.mxu0 0.0
  %660 = vmatpush2.msra.mxu0 0.0
  %661 = vmatprep.subr.mxu0 0.0
  %662 = vmatpush2.msra.mxu0 0.0
  %663 = vmatprep.subr.mxu0 0.0
  %664 = vmatpush2.msra.mxu0 0.0
  %665 = vmatprep.subr.mxu0 0.0
  %666 = vmatpush2.msra.mxu0 0.0
  %667 = vmatprep.subr.mxu0 0.0
  %668 = vmatpush2.msra.mxu0 0.0
  %669 = vmatprep.subr.mxu0 0.0
  %670 = vmatpush2.msra.mxu0 0.0
  %671 = vmatprep.subr.mxu0 0.0
  %672 = vmatpush2.msra.mxu0 0.0
  %673 = vmatprep.subr.mxu0 0.0
  %674 = vmatpush2.msra.mxu0 0.0
  %675 = vmatprep.subr.mxu0 0.0
  %676 = vmatpush2.msra.mxu0 0.0
  %677 = vmatprep.mubr.f32.mxu0 0.0
  %678 = vmatmul.mubr.f32.gmra.mxu0 %v611
  %v679 = vpop.f32.mrf.mxu0
  %v680 = vadd.f32 0.0, %v679
  %v681 = vpop.f32.mrf.mxu0
  %682 = vdwg.mxu0
  %v684 = vrot.slane %v680, 2
  %v686 = vadd.f32 %v131, %v684
  %v687 = vtanh.pop %v686
  %v688 = vld [vmem:[%s3] sm:$0xff]
  %v689 = vld [vmem:[%s3 + $0x8] sm:$0xff]
  %v690 = vld [vmem:[%s3 + $0x10] sm:$0xff]
  %v691 = vld [vmem:[%s3 + $0x18] sm:$0xff]
  %v692 = vlaneseq
  %v693 = vshrl.u32 %v692, 7
  %v694 = vsub.s32 0, %v693
  %v695 = vrot.slane %v23, %v694
  %v697 = vrot.slane %v687, 6
  %v698 = vsel %vm139, %v697, 0
  %700 = vmatprep.subr.mxu0 0.0
  %701 = vmatpush1.msra.mxu0 0.0
  %702 = vmatprep.subr.mxu0 0.0
  %703 = vmatpush1.msra.mxu0 0.0
  %704 = vmatprep.subr.mxu0 0.0
  %705 = vmatpush1.msra.mxu0 0.0
  %706 = vmatprep.subr.mxu0 0.0
  %707 = vmatpush1.msra.mxu0 0.0
  %708 = vmatprep.subr.mxu0 0.0
  %709 = vmatpush1.msra.mxu0 0.0
  %710 = vmatprep.subr.mxu0 0.0
  %711 = vmatpush1.msra.mxu0 0.0
  %712 = vmatprep.subr.mxu0 0.0
  %713 = vmatpush1.msra.mxu0 0.0
  %714 = vmatprep.subr.mxu0 0.0
  %715 = vmatpush1.msra.mxu0 0.0
  %716 = vmatprep.subr.mxu0 0.0
  %717 = vmatpush1.msra.mxu0 0.0
  %718 = vmatprep.subr.mxu0 0.0
  %719 = vmatpush1.msra.mxu0 0.0
  %720 = vmatprep.subr.mxu0 0.0
  %721 = vmatpush1.msra.mxu0 0.0
  %722 = vmatprep.subr.mxu0 0.0
  %723 = vmatpush1.msra.mxu0 0.0
  %724 = vmatprep.subr.mxu0 0.0
  %725 = vmatpush1.msra.mxu0 %v691
  %726 = vmatprep.subr.mxu0 0.0
  %727 = vmatpush1.msra.mxu0 %v690
  %728 = vmatprep.subr.mxu0 0.0
  %729 = vmatpush1.msra.mxu0 %v689
  %730 = vmatprep.subr.mxu0 0.0
  %731 = vmatpush1.msra.mxu0 %v688
  %732 = vmatprep.subr.mxu0 0.0
  %733 = vmatpush2.msra.mxu0 0.0
  %734 = vmatprep.subr.mxu0 0.0
  %735 = vmatpush2.msra.mxu0 0.0
  %736 = vmatprep.subr.mxu0 0.0
  %737 = vmatpush2.msra.mxu0 0.0
  %738 = vmatprep.subr.mxu0 0.0
  %739 = vmatpush2.msra.mxu0 0.0
  %740 = vmatprep.subr.mxu0 0.0
  %741 = vmatpush2.msra.mxu0 0.0
  %742 = vmatprep.subr.mxu0 0.0
  %743 = vmatpush2.msra.mxu0 0.0
  %744 = vmatprep.subr.mxu0 0.0
  %745 = vmatpush2.msra.mxu0 0.0
  %746 = vmatprep.subr.mxu0 0.0
  %747 = vmatpush2.msra.mxu0 0.0
  %748 = vmatprep.subr.mxu0 0.0
  %749 = vmatpush2.msra.mxu0 0.0
  %750 = vmatprep.subr.mxu0 0.0
  %751 = vmatpush2.msra.mxu0 0.0
  %752 = vmatprep.subr.mxu0 0.0
  %753 = vmatpush2.msra.mxu0 0.0
  %754 = vmatprep.subr.mxu0 0.0
  %755 = vmatpush2.msra.mxu0 0.0
  %756 = vmatprep.subr.mxu0 0.0
  %757 = vmatpush2.msra.mxu0 0.0
  %758 = vmatprep.subr.mxu0 0.0
  %759 = vmatpush2.msra.mxu0 0.0
  %760 = vmatprep.subr.mxu0 0.0
  %761 = vmatpush2.msra.mxu0 0.0
  %762 = vmatprep.subr.mxu0 0.0
  %763 = vmatpush2.msra.mxu0 0.0
  %764 = vmatprep.mubr.f32.mxu0 0.0
  %765 = vmatmul.mubr.f32.gmra.mxu0 %v698
  %v766 = vpop.f32.mrf.mxu0
  %v767 = vadd.f32 %v695, %v766
  %v768 = vpop.f32.mrf.mxu0
  %769 = vdwg.mxu0
  %v770 = vmax.f32 %v767, 0.0
  %v771 = vld [vmem:[%s4] sm:$0xff]
  %v772 = vld [vmem:[%s4 + $0x8] sm:$0xff]
  %v773 = vlaneseq
  %v774 = vshrl.u32 %v773, 7
  %v775 = vsub.s32 0, %v774
  %v776 = vrot.slane %v24, %v775
  %vm777 = vcmask 130048
  %v779 = vsel %vm777, %v770, 0
  %781 = vmatprep.subr.mxu0 0.0
  %782 = vmatpush1.msra.mxu0 0.0
  %783 = vmatprep.subr.mxu0 0.0
  %784 = vmatpush1.msra.mxu0 0.0
  %785 = vmatprep.subr.mxu0 0.0
  %786 = vmatpush1.msra.mxu0 0.0
  %787 = vmatprep.subr.mxu0 0.0
  %788 = vmatpush1.msra.mxu0 0.0
  %789 = vmatprep.subr.mxu0 0.0
  %790 = vmatpush1.msra.mxu0 0.0
  %791 = vmatprep.subr.mxu0 0.0
  %792 = vmatpush1.msra.mxu0 0.0
  %793 = vmatprep.subr.mxu0 0.0
  %794 = vmatpush1.msra.mxu0 0.0
  %795 = vmatprep.subr.mxu0 0.0
  %796 = vmatpush1.msra.mxu0 0.0
  %797 = vmatprep.subr.mxu0 0.0
  %798 = vmatpush1.msra.mxu0 0.0
  %799 = vmatprep.subr.mxu0 0.0
  %800 = vmatpush1.msra.mxu0 0.0
  %801 = vmatprep.subr.mxu0 0.0
  %802 = vmatpush1.msra.mxu0 0.0
  %803 = vmatprep.subr.mxu0 0.0
  %804 = vmatpush1.msra.mxu0 0.0
  %805 = vmatprep.subr.mxu0 0.0
  %806 = vmatpush1.msra.mxu0 0.0
  %807 = vmatprep.subr.mxu0 0.0
  %808 = vmatpush1.msra.mxu0 0.0
  %809 = vmatprep.subr.mxu0 0.0
  %810 = vmatpush1.msra.mxu0 %v772
  %811 = vmatprep.subr.mxu0 0.0
  %812 = vmatpush1.msra.mxu0 %v771
  %813 = vmatprep.subr.mxu0 0.0
  %814 = vmatpush2.msra.mxu0 0.0
  %815 = vmatprep.subr.mxu0 0.0
  %816 = vmatpush2.msra.mxu0 0.0
  %817 = vmatprep.subr.mxu0 0.0
  %818 = vmatpush2.msra.mxu0 0.0
  %819 = vmatprep.subr.mxu0 0.0
  %820 = vmatpush2.msra.mxu0 0.0
  %821 = vmatprep.subr.mxu0 0.0
  %822 = vmatpush2.msra.mxu0 0.0
  %823 = vmatprep.subr.mxu0 0.0
  %824 = vmatpush2.msra.mxu0 0.0
  %825 = vmatprep.subr.mxu0 0.0
  %826 = vmatpush2.msra.mxu0 0.0
  %827 = vmatprep.subr.mxu0 0.0
  %828 = vmatpush2.msra.mxu0 0.0
  %829 = vmatprep.subr.mxu0 0.0
  %830 = vmatpush2.msra.mxu0 0.0
  %831 = vmatprep.subr.mxu0 0.0
  %832 = vmatpush2.msra.mxu0 0.0
  %833 = vmatprep.subr.mxu0 0.0
  %834 = vmatpush2.msra.mxu0 0.0
  %835 = vmatprep.subr.mxu0 0.0
  %836 = vmatpush2.msra.mxu0 0.0
  %837 = vmatprep.subr.mxu0 0.0
  %838 = vmatpush2.msra.mxu0 0.0
  %839 = vmatprep.subr.mxu0 0.0
  %840 = vmatpush2.msra.mxu0 0.0
  %841 = vmatprep.subr.mxu0 0.0
  %842 = vmatpush2.msra.mxu0 0.0
  %843 = vmatprep.subr.mxu0 0.0
  %844 = vmatpush2.msra.mxu0 0.0
  %845 = vmatprep.mubr.f32.mxu0 0.0
  %846 = vmatmul.mubr.f32.gmra.mxu0 %v779
  %v847 = vpop.f32.mrf.mxu0
  %v848 = vadd.f32 %v776, %v847
  %v849 = vpop.f32.mrf.mxu0
  %850 = vdwg.mxu0
  %v851 = vxor.u32 %v848, 2147483648
  %v852 = vmul.f32 %v851, 1.442695
  %v853 = vpow.pop %v852
  %v854 = vadd.f32 %v853, 1.0
  %v855 = vrcp.pop %v854
  %v856 = vmul.f32 1.0, %v855
  %vm857 = vcmask 1024
  %858 = vst.msk [vmem:[%s6] sm:$0x3] %vm857, %v856
  // Predicated region
  $region26: #{rnn_ann_forward.1} parent=0 // pred_check
    _
  $region27: #{rnn_ann_forward.1} parent=0 // pred_check_branch
    %860 = sbr.rel (0) target = $region29
  $region28: #{rnn_ann_forward.1} parent=0 // pred_region
    _
  $region29: #{rnn_ann_forward.1} parent=0 // pred_fallthru
    _
  // Predicated region
  $region30: #{rnn_ann_forward.1} parent=0 // pred_check
    _
  $region31: #{rnn_ann_forward.1} parent=0 // pred_check_branch
    %862 = sbr.rel (0) target = $region33
  $region32: #{rnn_ann_forward.1} parent=0 // pred_region
    _
  $region33: #{rnn_ann_forward.1} parent=0 // pred_fallthru
    _

</llo_original>
